<compile_context>
chip_gen: v7x
topology: tpu7x:2x2x1
jax: 0.10.0
libtpu: 0.0.40
codegen_flags: <defaults>
</compile_context>

<pallas_src>
import math

import jax
import jax.numpy as jnp
from jax.experimental import pallas as pl
from jax.experimental.pallas import tpu as pltpu

LN_EPS = 1e-12


def _round_up(x, m):
    return (x + m - 1) // m * m


def _default_tm():
    """Per-generation M-tile: large enough that the streamed decoder weight is
    compute-bound (bf16 crossover ~670 flop/byte on v6e, ~310 on v7x, ~240 on v5e)."""
    try:
        kind = jax.devices()[0].device_kind.lower()
    except Exception:
        kind = ""
    if "v6" in kind:
        return 1024
    if "v5" in kind:
        return 512
    return 512  # v7x and unknown chips


def _lm_head_kernel(x_ref, w1_ref, b1_ref, gamma_ref, beta_ref,
                    dec_ref, dbias_ref, o_ref, h_ref):
    # x_ref:     (TM, H)  bf16 token tile
    # w1_ref:    (H, H)   bf16 dense weight, pre-transposed to (in, out)
    # b1_ref:    (1, H)   f32 dense bias
    # gamma_ref: (1, H)   f32 LayerNorm scale
    # beta_ref:  (1, H)   f32 LayerNorm shift
    # dec_ref:   (H, TN)  bf16 decoder weight tile, pre-transposed to (in, out)
    # dbias_ref: (1, TN)  f32 decoder bias tile
    # o_ref:     (TM, TN) output logits tile (bf16 by default)
    # h_ref:     (TM, H)  bf16 VMEM scratch holding the transformed hidden states
    j = pl.program_id(1)

    # Dense + gelu + LayerNorm only once per M-tile (first V iteration).  Result
    # stays resident in VMEM, already in the matmul dtype, for all V-tiles.
    @pl.when(j == 0)
    def _():
        h = jnp.dot(x_ref[...], w1_ref[...], preferred_element_type=jnp.float32)
        h = h + b1_ref[...]
        # exact (erf) gelu, matching torch.nn.functional.gelu used by TNLRv3
        h = 0.5 * h * (1.0 + jax.lax.erf(h * (1.0 / math.sqrt(2.0))))
        # LayerNorm over the full hidden dim (H un-tiled -> single-block reduction)
        mean = jnp.mean(h, axis=-1, keepdims=True)
        cen = h - mean
        var = jnp.mean(cen * cen, axis=-1, keepdims=True)
        h = cen * jax.lax.rsqrt(var + LN_EPS)
        h_ref[...] = (h * gamma_ref[...] + beta_ref[...]).astype(h_ref.dtype)

    # Decoder projection for this V-tile: bf16 x bf16 on the MXU, f32 accumulate.
    logits = jnp.dot(h_ref[...], dec_ref[...], preferred_element_type=jnp.float32)
    o_ref[...] = (logits + dbias_ref[...]).astype(o_ref.dtype)


def prepare_params(dense_w, dense_b, ln_gamma, ln_beta,
                   decoder_weight, decoder_bias,
                   weight_dtype=jnp.bfloat16, tn=None):
    """One-time parameter prep (call at load time, NOT per forward call):
    transpose weights to (in, out), cast to bf16, pad vocab to a multiple of the
    lane-dense V tile (TN kept a multiple of 256 for the v6e/v7x MXU)."""
    H = dense_w.shape[0]
    V = decoder_weight.shape[0]
    TN = tn if tn is not None else min(1024, _round_up(V, 256))
    V_pad = _round_up(V, TN)

    # TODO(synk): optional int8 decoder weights (per-column scale applied after the
    # f32 accumulate) would halve the dec_t HBM stream on v5e/v6e; not portable to
    # v7x (fp8-only MXU), so it is not enabled here.
    w1_t = jnp.asarray(dense_w).T.astype(weight_dtype)            # (H_in, H_out)
    dec_t = jnp.asarray(decoder_weight).T.astype(weight_dtype)    # (H, V)
    dbias = jnp.asarray(decoder_bias).astype(jnp.float32)
    if V_pad != V:
        dec_t = jnp.pad(dec_t, ((0, 0), (0, V_pad - V)))
        dbias = jnp.pad(dbias, (0, V_pad - V))

    return dict(
        w1_t=w1_t,
        b1=jnp.asarray(dense_b).astype(jnp.float32).reshape(1, H),
        gamma=jnp.asarray(ln_gamma).astype(jnp.float32).reshape(1, H),
        beta=jnp.asarray(ln_beta).astype(jnp.float32).reshape(1, H),
        dec_t=dec_t,
        dbias=dbias.reshape(1, V_pad),
        vocab_size=V,
        tn=TN,
    )


def _vmem_bytes_estimate(TM, TN, H, w_bytes, act_bytes, out_bytes):
    b = 0
    b += 2 * TM * H * act_bytes        # x tile, double-buffered
    b += 2 * H * H * w_bytes           # dense weight (constant index, still 2-buf)
    b += 2 * 3 * max(H, 128) * 4       # dense bias / gamma / beta
    b += 2 * H * TN * w_bytes          # decoder weight tile, double-buffered
    b += 2 * max(TN, 128) * 4          # decoder bias tile
    b += 2 * TM * TN * out_bytes       # output tile, double-buffered
    b += TM * H * w_bytes              # bf16 hidden-state scratch
    return b


def bert_lm_prediction_head(x, params, *, tm=None, out_dtype=jnp.bfloat16):
    """x: (B, S, H) activations.  params: output of prepare_params.
    Returns (B, S, V) logits in out_dtype (bf16 by default to halve the M*V
    writeback; pass out_dtype=jnp.float32 if the downstream loss requires it)."""
    B, S, H = x.shape
    V = params["vocab_size"]
    TN = params["tn"]
    V_pad = params["dec_t"].shape[1]
    act_dtype = params["w1_t"].dtype
    M = B * S

    TM = min(tm if tm is not None else _default_tm(), _round_up(M, 8))
    M_pad = _round_up(M, TM)

    # Pre-cast activations to the matmul dtype once in the wrapper (halves the
    # x-tile DMA + its double-buffered VMEM and removes an in-kernel cast).
    x2 = x.reshape(M, H).astype(act_dtype)
    if M_pad != M:
        x2 = jnp.pad(x2, ((0, M_pad - M), (0, 0)))

    grid = (M_pad // TM, V_pad // TN)

    vmem_est = _vmem_bytes_estimate(
        TM, TN, H,
        w_bytes=jnp.dtype(act_dtype).itemsize,
        act_bytes=jnp.dtype(act_dtype).itemsize,
        out_bytes=jnp.dtype(out_dtype).itemsize)
    # Explicit scoped-VMEM limit so the bigger per-generation tiles get full
    # double-buffering (v5e default is ~16 MiB); cap at 48 MiB to leave headroom
    # under v7x's 64 MiB physical VMEM, but never below what the kernel needs.
    vmem_limit = min(max(vmem_est + (8 << 20), 24 << 20), 48 << 20)
    vmem_limit = max(vmem_limit, vmem_est + (2 << 20))

    # TODO(synk): for H >= ~2048 on v7x, K-tile the dense (H,H) stage and
    # single-buffer the constant-index operands (pipeline_mode=pl.Buffered(1)) to
    # keep the working set under 64 MiB; unnecessary for BERT-base/large hidden sizes.
    out = pl.pallas_call(
        _lm_head_kernel,
        out_shape=jax.ShapeDtypeStruct((M_pad, V_pad), out_dtype),
        grid_spec=pltpu.PrefetchScalarGridSpec(
            num_scalar_prefetch=0,
            grid=grid,
            in_specs=[
                pl.BlockSpec((TM, H), lambda i, j: (i, 0)),    # x
                pl.BlockSpec((H, H), lambda i, j: (0, 0)),     # dense weight (in,out)
                pl.BlockSpec((1, H), lambda i, j: (0, 0)),     # dense bias
                pl.BlockSpec((1, H), lambda i, j: (0, 0)),     # LN gamma
                pl.BlockSpec((1, H), lambda i, j: (0, 0)),     # LN beta
                pl.BlockSpec((H, TN), lambda i, j: (0, j)),    # decoder weight (in,out)
                pl.BlockSpec((1, TN), lambda i, j: (0, j)),    # decoder bias
            ],
            out_specs=pl.BlockSpec((TM, TN), lambda i, j: (i, j)),
            scratch_shapes=[pltpu.VMEM((TM, H), act_dtype)],   # bf16 hidden scratch
        ),
        compiler_params=pltpu.CompilerParams(
            dimension_semantics=("parallel", "arbitrary"),
            vmem_limit_bytes=int(vmem_limit)),
    )(x2, params["w1_t"], params["b1"], params["gamma"], params["beta"],
      params["dec_t"], params["dbias"])

    out = out[:M, :V]
    return out.reshape(B, S, V)


def _reference(x, dense_w, dense_b, ln_gamma, ln_beta, decoder_weight, decoder_bias,
               weight_dtype=jnp.bfloat16):
    """Plain-JAX reference mirroring the kernel's bf16 streaming / f32 accumulate."""
    B, S, H = x.shape
    x2 = x.reshape(-1, H).astype(weight_dtype)
    h = jnp.dot(x2, dense_w.T.astype(weight_dtype),
                preferred_element_type=jnp.float32) + dense_b
    h = 0.5 * h * (1.0 + jax.lax.erf(h * (1.0 / math.sqrt(2.0))))
    mean = h.mean(-1, keepdims=True)
    var = ((h - mean) ** 2).mean(-1, keepdims=True)
    h = (h - mean) * jax.lax.rsqrt(var + LN_EPS) * ln_gamma + ln_beta
    logits = jnp.dot(h.astype(weight_dtype), decoder_weight.T.astype(weight_dtype),
                     preferred_element_type=jnp.float32) + decoder_bias
    return logits.reshape(B, S, -1)


if __name__ == "__main__":
    root_key = jax.random.PRNGKey(0)

    def run_case(key, B, S, H, V, tm=None, tn=None):
        k_x, k_w1, k_b1, k_dec, k_db, k_g, k_be = jax.random.split(key, 7)
        x = jax.random.normal(k_x, (B, S, H), dtype=jnp.float32)
        dense_w = jax.random.normal(k_w1, (H, H), dtype=jnp.float32) / math.sqrt(H)
        dense_b = jax.random.normal(k_b1, (H,), dtype=jnp.float32) * 0.02
        ln_gamma = 1.0 + 0.1 * jax.random.normal(k_g, (H,), dtype=jnp.float32)
        ln_beta = 0.05 * jax.random.normal(k_be, (H,), dtype=jnp.float32)
        decoder_weight = jax.random.normal(k_dec, (V, H), dtype=jnp.float32) / math.sqrt(H)
        decoder_bias = 0.02 * jax.random.normal(k_db, (V,), dtype=jnp.float32)

        params = prepare_params(dense_w, dense_b, ln_gamma, ln_beta,
                                decoder_weight, decoder_bias, tn=tn)
        logits = bert_lm_prediction_head(x, params, tm=tm)
        jax.block_until_ready(logits)

        ref = _reference(x, dense_w, dense_b, ln_gamma, ln_beta,
                         decoder_weight, decoder_bias)
        assert logits.shape == (B, S, V), (logits.shape, (B, S, V))
        assert jnp.allclose(logits.astype(jnp.float32), ref, atol=5e-2, rtol=5e-2), \
            f"mismatch vs reference for case B={B} S={S} H={H} V={V}"

    k1, k2 = jax.random.split(root_key)

    # Small shape consistent with the module: batch=2, seq=8, hidden=32, vocab=128.
    run_case(k1, B=2, S=8, H=32, V=128)

    # Multi-tile case: exercises the pl.when(j==0)/scratch-reuse path across
    # multiple V-tiles and multiple M-tiles (grid = (2, 4)).
    run_case(k2, B=2, S=128, H=256, V=512, tm=128, tn=128)

    print("KERNEL_OK")
</pallas_src>

<mosaic_0001>
module attributes {stable_mosaic.version = 11 : i64} {
  func.func @_lm_head_kernel(%arg0: i32, %arg1: i32, %arg2: memref<16x32xbf16, #tpu.memory_space<vmem>>, %arg3: memref<32x32xbf16, #tpu.memory_space<vmem>>, %arg4: memref<1x32xf32, #tpu.memory_space<vmem>>, %arg5: memref<1x32xf32, #tpu.memory_space<vmem>>, %arg6: memref<1x32xf32, #tpu.memory_space<vmem>>, %arg7: memref<32x256xbf16, #tpu.memory_space<vmem>>, %arg8: memref<1x256xf32, #tpu.memory_space<vmem>>, %arg9: memref<16x256xbf16, #tpu.memory_space<vmem>>, %arg10: memref<16x32xbf16, #tpu.memory_space<vmem>>) attributes {dimension_semantics = [#tpu.dimension_semantics<parallel>, #tpu.dimension_semantics<arbitrary>], iteration_bounds = array<i64: 1, 1>, scalar_prefetch = 0 : i64, scratch_operands = 1 : i64, tpu.core_type = #tpu.core_type<tc>, window_params = [{transform_indices = @transform_0, window_bounds = array<i64: 16, 32>}, {pipeline_mode = #tpu.pipeline_mode<synchronous>, transform_indices = @transform_1, window_bounds = array<i64: 32, 32>}, {pipeline_mode = #tpu.pipeline_mode<synchronous>, transform_indices = @transform_2, window_bounds = array<i64: 1, 32>}, {pipeline_mode = #tpu.pipeline_mode<synchronous>, transform_indices = @transform_3, window_bounds = array<i64: 1, 32>}, {pipeline_mode = #tpu.pipeline_mode<synchronous>, transform_indices = @transform_4, window_bounds = array<i64: 1, 32>}, {transform_indices = @transform_5, window_bounds = array<i64: 32, 256>}, {transform_indices = @transform_6, window_bounds = array<i64: 1, 256>}, {transform_indices = @transform_7, window_bounds = array<i64: 16, 256>}]} {
    %c0_i32 = arith.constant 0 : i32
    %0 = arith.cmpi eq, %arg1, %c0_i32 : i32
    %1 = arith.extui %0 : i1 to i32
    %c0_i32_0 = arith.constant 0 : i32
    %2 = arith.cmpi ne, %1, %c0_i32_0 : i32
    scf.if %2 {
      %c0_8 = arith.constant 0 : index
      %c0_9 = arith.constant 0 : index
      %11 = vector.load %arg2[%c0_8, %c0_9] : memref<16x32xbf16, #tpu.memory_space<vmem>>, vector<16x32xbf16>
      %c0_10 = arith.constant 0 : index
      %c0_11 = arith.constant 0 : index
      %12 = vector.load %arg3[%c0_10, %c0_11] : memref<32x32xbf16, #tpu.memory_space<vmem>>, vector<32x32xbf16>
      %cst_12 = arith.constant dense<0.000000e+00> : vector<16x32xf32>
      %13 = tpu.matmul %11, %12, %cst_12 {dimension_numbers = #tpu.dot_dimension_numbers<[1], [0], [0], [1], [0, 0, 1, 1], [], []>} : vector<16x32xbf16>, vector<32x32xbf16>, vector<16x32xf32> -> vector<16x32xf32>
      %c0_13 = arith.constant 0 : index
      %c0_14 = arith.constant 0 : index
      %14 = vector.load %arg4[%c0_13, %c0_14] : memref<1x32xf32, #tpu.memory_space<vmem>>, vector<1x32xf32>
      %15 = vector.broadcast %14 : vector<1x32xf32> to vector<16x32xf32>
      %16 = arith.addf %13, %15 : vector<16x32xf32>
      %cst_15 = arith.constant 5.000000e-01 : f32
      %17 = vector.broadcast %cst_15 : f32 to vector<16x32xf32>
      %18 = arith.mulf %17, %16 : vector<16x32xf32>
      %cst_16 = arith.constant 0.707106769 : f32
      %19 = vector.broadcast %cst_16 : f32 to vector<16x32xf32>
      %20 = arith.mulf %16, %19 : vector<16x32xf32>
      %21 = math.erf %20 : vector<16x32xf32>
      %cst_17 = arith.constant 1.000000e+00 : f32
      %22 = vector.broadcast %cst_17 : f32 to vector<16x32xf32>
      %23 = arith.addf %22, %21 : vector<16x32xf32>
      %24 = arith.mulf %18, %23 : vector<16x32xf32>
      %cst_18 = arith.constant dense<0.000000e+00> : vector<16xf32>
      %25 = vector.multi_reduction <add>, %24, %cst_18 [1] : vector<16x32xf32> to vector<16xf32>
      %26 = vector.shape_cast %25 : vector<16xf32> to vector<16x1xf32>
      %cst_19 = arith.constant 3.200000e+01 : f32
      %27 = vector.broadcast %cst_19 : f32 to vector<16x1xf32>
      %28 = arith.divf %26, %27 : vector<16x1xf32>
      %29 = vector.broadcast %28 : vector<16x1xf32> to vector<16x32xf32>
      %30 = arith.subf %24, %29 : vector<16x32xf32>
      %31 = arith.mulf %30, %30 : vector<16x32xf32>
      %cst_20 = arith.constant dense<0.000000e+00> : vector<16xf32>
      %32 = vector.multi_reduction <add>, %31, %cst_20 [1] : vector<16x32xf32> to vector<16xf32>
      %33 = vector.shape_cast %32 : vector<16xf32> to vector<16x1xf32>
      %cst_21 = arith.constant 3.200000e+01 : f32
      %34 = vector.broadcast %cst_21 : f32 to vector<16x1xf32>
      %35 = arith.divf %33, %34 : vector<16x1xf32>
      %cst_22 = arith.constant 9.99999996E-13 : f32
      %36 = vector.broadcast %cst_22 : f32 to vector<16x1xf32>
      %37 = arith.addf %35, %36 : vector<16x1xf32>
      %38 = math.rsqrt %37 : vector<16x1xf32>
      %39 = vector.broadcast %38 : vector<16x1xf32> to vector<16x32xf32>
      %40 = arith.mulf %30, %39 : vector<16x32xf32>
      %c0_23 = arith.constant 0 : index
      %c0_24 = arith.constant 0 : index
      %41 = vector.load %arg5[%c0_23, %c0_24] : memref<1x32xf32, #tpu.memory_space<vmem>>, vector<1x32xf32>
      %42 = vector.broadcast %41 : vector<1x32xf32> to vector<16x32xf32>
      %43 = arith.mulf %40, %42 : vector<16x32xf32>
      %c0_25 = arith.constant 0 : index
      %c0_26 = arith.constant 0 : index
      %44 = vector.load %arg6[%c0_25, %c0_26] : memref<1x32xf32, #tpu.memory_space<vmem>>, vector<1x32xf32>
      %45 = vector.broadcast %44 : vector<1x32xf32> to vector<16x32xf32>
      %46 = arith.addf %43, %45 : vector<16x32xf32>
      %47 = arith.truncf %46 : vector<16x32xf32> to vector<16x32xbf16>
      %c0_27 = arith.constant 0 : index
      %c0_28 = arith.constant 0 : index
      %48 = vector.load %arg10[%c0_27, %c0_28] : memref<16x32xbf16, #tpu.memory_space<vmem>>, vector<16x32xbf16>
      tpu.vector_store %arg10[%c0_27, %c0_28], %47 {strides = array<i32>} : memref<16x32xbf16, #tpu.memory_space<vmem>>, vector<16x32xbf16>,
    } else {
    }
    %c0 = arith.constant 0 : index
    %c0_1 = arith.constant 0 : index
    %3 = vector.load %arg10[%c0, %c0_1] : memref<16x32xbf16, #tpu.memory_space<vmem>>, vector<16x32xbf16>
    %c0_2 = arith.constant 0 : index
    %c0_3 = arith.constant 0 : index
    %4 = vector.load %arg7[%c0_2, %c0_3] : memref<32x256xbf16, #tpu.memory_space<vmem>>, vector<32x256xbf16>
    %cst = arith.constant dense<0.000000e+00> : vector<16x256xf32>
    %5 = tpu.matmul %3, %4, %cst {dimension_numbers = #tpu.dot_dimension_numbers<[1], [0], [0], [1], [0, 0, 1, 1], [], []>} : vector<16x32xbf16>, vector<32x256xbf16>, vector<16x256xf32> -> vector<16x256xf32>
    %c0_4 = arith.constant 0 : index
    %c0_5 = arith.constant 0 : index
    %6 = vector.load %arg8[%c0_4, %c0_5] : memref<1x256xf32, #tpu.memory_space<vmem>>, vector<1x256xf32>
    %7 = vector.broadcast %6 : vector<1x256xf32> to vector<16x256xf32>
    %8 = arith.addf %5, %7 : vector<16x256xf32>
    %9 = arith.truncf %8 : vector<16x256xf32> to vector<16x256xbf16>
    %c0_6 = arith.constant 0 : index
    %c0_7 = arith.constant 0 : index
    %10 = vector.load %arg9[%c0_6, %c0_7] : memref<16x256xbf16, #tpu.memory_space<vmem>>, vector<16x256xbf16>
    tpu.vector_store %arg9[%c0_6, %c0_7], %9 {strides = array<i32>} : memref<16x256xbf16, #tpu.memory_space<vmem>>, vector<16x256xbf16>,
    return
  }
  func.func @transform_0(%arg0: i32, %arg1: i32) -> (i32, i32) {
    %c0_i32 = arith.constant 0 : i32
    %c0_i32_0 = arith.constant 0 : i32
    return %arg0, %c0_i32 : i32, i32
  }
  func.func @transform_1(%arg0: i32, %arg1: i32) -> (i32, i32) {
    %c0_i32 = arith.constant 0 : i32
    %c0_i32_0 = arith.constant 0 : i32
    %c0_i32_1 = arith.constant 0 : i32
    return %c0_i32, %c0_i32_0 : i32, i32
  }
  func.func @transform_2(%arg0: i32, %arg1: i32) -> (i32, i32) {
    %c0_i32 = arith.constant 0 : i32
    %c0_i32_0 = arith.constant 0 : i32
    %c0_i32_1 = arith.constant 0 : i32
    return %c0_i32, %c0_i32_0 : i32, i32
  }
  func.func @transform_3(%arg0: i32, %arg1: i32) -> (i32, i32) {
    %c0_i32 = arith.constant 0 : i32
    %c0_i32_0 = arith.constant 0 : i32
    %c0_i32_1 = arith.constant 0 : i32
    return %c0_i32, %c0_i32_0 : i32, i32
  }
  func.func @transform_4(%arg0: i32, %arg1: i32) -> (i32, i32) {
    %c0_i32 = arith.constant 0 : i32
    %c0_i32_0 = arith.constant 0 : i32
    %c0_i32_1 = arith.constant 0 : i32
    return %c0_i32, %c0_i32_0 : i32, i32
  }
  func.func @transform_5(%arg0: i32, %arg1: i32) -> (i32, i32) {
    %c0_i32 = arith.constant 0 : i32
    %c0_i32_0 = arith.constant 0 : i32
    return %c0_i32, %arg1 : i32, i32
  }
  func.func @transform_6(%arg0: i32, %arg1: i32) -> (i32, i32) {
    %c0_i32 = arith.constant 0 : i32
    %c0_i32_0 = arith.constant 0 : i32
    return %c0_i32, %arg1 : i32, i32
  }
  func.func @transform_7(%arg0: i32, %arg1: i32) -> (i32, i32) {
    %c0_i32 = arith.constant 0 : i32
    return %arg0, %arg1 : i32, i32
  }
}

</mosaic_0001>

<llo_original>
// kernel: tpu_custom_call.1
$region0: #{tpu_custom_call.1}
  #allocation0 [shape = 'u32[]', space=smem, size = 0x4, offset = 0x4, fixed_abs, tag = 'smem constant byte address 0x4 - core index']
  #allocation1 [shape = 'u32[144,128]{1,0:T(1,128)}', space=vmem, size = 0x12000, scoped, tag = 'internal scratch']
  #allocation2 [shape = 'bf16[16,32]{1,0:T(16,128)(2,1)}', space=vmem, size = 0x1000, scoped, tag = 'scratch operand']
  %s0 = inlined_call_operand.hbm [shape: bf16[16,32], index: 0, kind: input, shape index: {}]
  %s1 = inlined_call_operand.hbm [shape: bf16[32,32], index: 1, kind: input, shape index: {}]
  %s2 = inlined_call_operand.vmem [shape: f32[1,32], index: 2, kind: input, shape index: {}]
  %s3 = inlined_call_operand.vmem [shape: f32[1,32], index: 3, kind: input, shape index: {}]
  %s4 = inlined_call_operand.vmem [shape: f32[1,32], index: 4, kind: input, shape index: {}]
  %s5 = inlined_call_operand.hbm [shape: bf16[32,256], index: 5, kind: input, shape index: {}]
  %s6 = inlined_call_operand.vmem [shape: f32[1,256], index: 6, kind: input, shape index: {}]
  %s7 = inlined_call_operand.hbm [shape: bf16[16,256], index: 7, kind: output, shape index: {}]
  %s8 = sld [smem:[#allocation0]]
  $region54: #{tpu_custom_call.1} parent=0
    _
  %s10 = ssub.s32 1, %s8
  %s11 = scalar_select 0, %s10, %s8
  $region1: #{tpu_custom_call.1} parent=0
    #allocation3 [shape = 'u8[4096]{0}', space=vmem, size = 0x1000, scoped, tag = 'input window, operand 0, single buffered']
    #allocation4 [shape = 's32[1]{0}', space=sflag, size = 0x4, scoped, tag = 'scoped memory for tpu_custom_call.1']
    #allocation5 [shape = 's32[1]{0}', space=sflag, size = 0x4, scoped, tag = 'scoped memory for tpu_custom_call.1']
    #allocation6 [shape = 'u8[8192]{0}', space=vmem, size = 0x2000, scoped, tag = 'input window, operand 1, single buffered']
    #allocation7 [shape = 's32[1]{0}', space=sflag, size = 0x4, scoped, tag = 'scoped memory for tpu_custom_call.1']
    #allocation8 [shape = 'u8[16384]{0}', space=vmem, size = 0x4000, scoped, tag = 'input window, operand 5, single buffered']
    #allocation9 [shape = 'u8[8192]{0}', space=vmem, size = 0x2000, scoped, tag = 'output window, operand 0, single buffered']
    %12 = vsyncpa [#allocation4], 0
    %13 = vsyncpa [#allocation7], 0
    %14 = vsyncpa [#allocation5], 0
    // Predicated region
    $region2: #{tpu_custom_call.1} parent=1 // pred_check
      _
    $region3: #{tpu_custom_call.1} parent=1 // pred_check_branch
      %16 = sbr.rel (0) target = $region5
    $region4: #{tpu_custom_call.1} parent=1 // pred_region
      %s18 = ssub.s32 128, 128
      %19 = vsyncadd [#allocation4], %s18
      %s20 = sshll.u32 [#allocation3], 4
      %s21 = int_to_ptr.vmem [resolvable:$true] %s20
      %26 = dma.hbm_to_vmem [thread:$0]  %s0, 128, %s21, [#allocation4], 64, 64, 4
    $region5: #{tpu_custom_call.1} parent=1 // pred_fallthru
      _
    // Predicated region
    $region6: #{tpu_custom_call.1} parent=1 // pred_check
      _
    $region7: #{tpu_custom_call.1} parent=1 // pred_check_branch
      %28 = sbr.rel (0) target = $region9
    $region8: #{tpu_custom_call.1} parent=1 // pred_region
      %s30 = ssub.s32 256, 256
      %31 = vsyncadd [#allocation7], %s30
      %s32 = sshll.u32 [#allocation6], 4
      %s33 = int_to_ptr.vmem [resolvable:$true] %s32
      %38 = dma.hbm_to_vmem [thread:$0]  %s1, 256, %s33, [#allocation7], 64, 64, 4
    $region9: #{tpu_custom_call.1} parent=1 // pred_fallthru
      _
    // Predicated region
    $region10: #{tpu_custom_call.1} parent=1 // pred_check
      _
    $region11: #{tpu_custom_call.1} parent=1 // pred_check_branch
      %40 = sbr.rel (0) target = $region13
    $region12: #{tpu_custom_call.1} parent=1 // pred_region
      _
    $region13: #{tpu_custom_call.1} parent=1 // pred_fallthru
      _
    // Predicated region
    $region14: #{tpu_custom_call.1} parent=1 // pred_check
      _
    $region15: #{tpu_custom_call.1} parent=1 // pred_check_branch
      %42 = sbr.rel (0) target = $region17
    $region16: #{tpu_custom_call.1} parent=1 // pred_region
      _
    $region17: #{tpu_custom_call.1} parent=1 // pred_fallthru
      _
    // Predicated region
    $region18: #{tpu_custom_call.1} parent=1 // pred_check
      _
    $region19: #{tpu_custom_call.1} parent=1 // pred_check_branch
      %44 = sbr.rel (0) target = $region21
    $region20: #{tpu_custom_call.1} parent=1 // pred_region
      _
    $region21: #{tpu_custom_call.1} parent=1 // pred_fallthru
      _
    // Predicated region
    $region22: #{tpu_custom_call.1} parent=1 // pred_check
      _
    $region23: #{tpu_custom_call.1} parent=1 // pred_check_branch
      %46 = sbr.rel (0) target = $region25
    $region24: #{tpu_custom_call.1} parent=1 // pred_region
      %s48 = ssub.s32 512, 512
      %49 = vsyncadd [#allocation7], %s48
      %s50 = sshll.u32 [#allocation8], 4
      %s51 = int_to_ptr.vmem [resolvable:$true] %s50
      %56 = dma.hbm_to_vmem [thread:$0]  %s5, 512, %s51, [#allocation7], 128, 128, 8
    $region25: #{tpu_custom_call.1} parent=1 // pred_fallthru
      _
    // Predicated region
    $region26: #{tpu_custom_call.1} parent=1 // pred_check
      _
    $region27: #{tpu_custom_call.1} parent=1 // pred_check_branch
      %58 = sbr.rel (0) target = $region29
    $region28: #{tpu_custom_call.1} parent=1 // pred_region
      _
    $region29: #{tpu_custom_call.1} parent=1 // pred_fallthru
      _
    // Predicated region
    $region30: #{tpu_custom_call.1} parent=1 // pred_check
      _
    $region31: #{tpu_custom_call.1} parent=1 // pred_check_branch
      %60 = sbr.rel (0) target = $region33
    $region32: #{tpu_custom_call.1} parent=1 // pred_region
      %61 = dma.done [#allocation4], 128
    $region33: #{tpu_custom_call.1} parent=1 // pred_fallthru
      _
    // Predicated region
    $region34: #{tpu_custom_call.1} parent=1 // pred_check
      _
    $region35: #{tpu_custom_call.1} parent=1 // pred_check_branch
      %63 = sbr.rel (0) target = $region37
    $region36: #{tpu_custom_call.1} parent=1 // pred_region
      %64 = dma.done [#allocation7], 256
    $region37: #{tpu_custom_call.1} parent=1 // pred_fallthru
      _
    // Predicated region
    $region38: #{tpu_custom_call.1} parent=1 // pred_check
      _
    $region39: #{tpu_custom_call.1} parent=1 // pred_check_branch
      %66 = sbr.rel (0) target = $region41
    $region40: #{tpu_custom_call.1} parent=1 // pred_region
      %67 = dma.done [#allocation7], 512
    $region41: #{tpu_custom_call.1} parent=1 // pred_fallthru
      _
    %p69 = scmp.eq.s32.totalorder 0, 0
    // Predicated region
    $region42: #{tpu_custom_call.1} parent=1 // pred_check
      %p70 = pneg %p69
    $region43: #{tpu_custom_call.1} parent=1 // pred_check_branch
      %72 = sbr.rel (%p70) target = $region45
    $region44: #{tpu_custom_call.1} parent=1 // pred_region
      %v73 = vld [vmem:[#allocation3] sm:$0xf]
      %v74 = vld [vmem:[#allocation3 + $0x4] sm:$0xf]
      %v75 = vld [vmem:[#allocation6] sm:$0xf]
      %v76 = vld [vmem:[#allocation6 + $0x4] sm:$0xf]
      %v77 = vld [vmem:[#allocation6 + $0x8] sm:$0xf]
      %v78 = vld [vmem:[#allocation6 + $0xc] sm:$0xf]
      %v79 = vld [vmem:[%s2] sm:$0x1]
      %v81 = vlaneseq
      %v82 = vshrl.u32 %v81, 7
      %v83 = vsub.s32 0, %v82
      %v84 = vrot.slane %v79, %v83
      %v88 = vunpack.c.l.b16 %v73
      %v89 = vunpack.c.l.b16 %v74
      %v90 = vpack.c.b16 %v89, %v88
      %v95 = vunpack.c.l.b16 %v75
      %v96 = vunpack.c.l.b16 %v76
      %v97 = vunpack.c.l.b16 %v77
      %v98 = vunpack.c.l.b16 %v78
      %v99 = vpack.c.b16 %v96, %v95
      %v100 = vpack.c.b16 %v98, %v97
      %vm103 = vcmask 261120
      %v105 = vsel %vm103, %v90, 0
      %107 = vmatprep.subr.bf16.mxu0 0
      %108 = vmatpush1.bf16.msra.mxu0 %v99
      %109 = vmatprep.subr.bf16.mxu0 0
      %110 = vmatpush1.bf16.msra.mxu0 %v100
      %111 = vmatprep.subr.bf16.mxu0 0
      %112 = vmatpush1.bf16.msra.mxu0 0
      %113 = vmatprep.subr.bf16.mxu0 0
      %114 = vmatpush1.bf16.msra.mxu0 0
      %115 = vmatprep.subr.bf16.mxu0 0
      %116 = vmatpush1.bf16.msra.mxu0 0
      %117 = vmatprep.subr.bf16.mxu0 0
      %118 = vmatpush1.bf16.msra.mxu0 0
      %119 = vmatprep.subr.bf16.mxu0 0
      %120 = vmatpush1.bf16.msra.mxu0 0
      %121 = vmatprep.subr.bf16.mxu0 0
      %122 = vmatpush1.bf16.msra.mxu0 0
      %123 = vmatprep.subr.bf16.mxu0 0
      %124 = vmatpush1.bf16.msra.mxu0 0
      %125 = vmatprep.subr.bf16.mxu0 0
      %126 = vmatpush1.bf16.msra.mxu0 0
      %127 = vmatprep.subr.bf16.mxu0 0
      %128 = vmatpush1.bf16.msra.mxu0 0
      %129 = vmatprep.subr.bf16.mxu0 0
      %130 = vmatpush1.bf16.msra.mxu0 0
      %131 = vmatprep.subr.bf16.mxu0 0
      %132 = vmatpush1.bf16.msra.mxu0 0
      %133 = vmatprep.subr.bf16.mxu0 0
      %134 = vmatpush1.bf16.msra.mxu0 0
      %135 = vmatprep.subr.bf16.mxu0 0
      %136 = vmatpush1.bf16.msra.mxu0 0
      %137 = vmatprep.subr.bf16.mxu0 0
      %138 = vmatpush1.bf16.msra.mxu0 0
      %139 = vmatprep.mubr.bf16.mxu0 0
      %140 = vmatmul.mubr.bf16.gmra.mrb[0].mxu0 %v105
      %v141 = vpop.f32.mrb[0].mxu0
      %v142 = vadd.f32 %v84, %v141
      %v143 = vpop.f32.mrb[0].mxu0
      %v144 = vpop.f32.mrb[0].mxu0
      %v145 = vadd.f32 %v84, %v144
      %v146 = vpop.f32.mrb[0].mxu0
      %147 = vdwg.mxu0
      %v148 = vmul.f32 %v142, 0.5
      %v149 = vmul.f32 %v145, 0.5
      %v150 = vmul.f32 %v142, 0.70710677
      %v151 = vmul.f32 %v145, 0.70710677
      %v152 = verf.f32.pop %v150
      %v153 = verf.f32.pop %v151
      %v154 = vadd.f32 %v152, 1.0
      %v155 = vadd.f32 %v153, 1.0
      %v156 = vmul.f32 %v148, %v154
      %v157 = vmul.f32 %v149, %v155
      %v158 = vsel %vm103, %v156, 0.0
      %159 = vadd.xlane.f32.xlu0 %v158
      %v160 = vpop.xlane.xlu0 %159
      %v161 = vsel %vm103, %v157, 0.0
      %162 = vadd.xlane.f32.xlu0 %v161
      %v163 = vpop.xlane.xlu0 %162
      %v164 = vrcp.pop 32.0
      %v165 = vmul.f32 %v160, %v164
      %v166 = vmul.f32 %v163, %v164
      %v167 = vsub.f32 %v156, %v165
      %v168 = vsub.f32 %v157, %v166
      %v169 = vmul.f32 %v167, %v167
      %v170 = vmul.f32 %v168, %v168
      %v171 = vsel %vm103, %v169, 0.0
      %172 = vadd.xlane.f32.xlu0 %v171
      %v173 = vpop.xlane.xlu0 %172
      %v174 = vsel %vm103, %v170, 0.0
      %175 = vadd.xlane.f32.xlu0 %v174
      %v176 = vpop.xlane.xlu0 %175
      %v177 = vmul.f32 %v173, %v164
      %v178 = vmul.f32 %v176, %v164
      %v179 = vadd.f32 %v177, 1e-12
      %v180 = vadd.f32 %v178, 1e-12
      %v181 = vrsqrt.pop %v179
      %v182 = vrsqrt.pop %v180
      %v183 = vmul.f32 %v167, %v181
      %v184 = vmul.f32 %v168, %v182
      %v185 = vld [vmem:[%s3] sm:$0x1]
      %v187 = vlaneseq
      %v188 = vshrl.u32 %v187, 7
      %v189 = vsub.s32 0, %v188
      %v190 = vrot.slane %v185, %v189
      %v192 = vmul.f32 %v183, %v190
      %v193 = vmul.f32 %v184, %v190
      %v194 = vld [vmem:[%s4] sm:$0x1]
      %v196 = vlaneseq
      %v197 = vshrl.u32 %v196, 7
      %v198 = vsub.s32 0, %v197
      %v199 = vrot.slane %v194, %v198
      %v201 = vadd.f32 %v192, %v199
      %v202 = vadd.f32 %v193, %v199
      %v203 = vpack.c.bf16 %v202, %v201
      %204 = vst.msk [vmem:[#allocation2] sm:$0xff] %vm103, %v203
    $region45: #{tpu_custom_call.1} parent=1 // pred_fallthru
      _
    %v205 = vld [vmem:[#allocation2] sm:$0xff]
    %v206 = vld [vmem:[#allocation8] sm:$0xff]
    %v207 = vld [vmem:[#allocation8 + $0x8] sm:$0xff]
    %v208 = vld [vmem:[#allocation8 + $0x10] sm:$0xff]
    %v209 = vld [vmem:[#allocation8 + $0x18] sm:$0xff]
    %v210 = vld [vmem:[%s6] sm:$0x3]
    %v212 = vlaneseq
    %v213 = vshrl.u32 %v212, 7
    %v214 = vsub.s32 0, %v213
    %v215 = vrot.slane %v210, %v214
    %v216 = vlaneseq
    %v217 = vshrl.u32 %v216, 7
    %v218 = vsub.s32 1, %v217
    %v219 = vrot.slane %v210, %v218
    %v226 = vunpack.c.l.b16 %v206
    %v227 = vunpack.c.h.b16 %v206
    %v228 = vunpack.c.l.b16 %v207
    %v229 = vunpack.c.h.b16 %v207
    %v230 = vunpack.c.l.b16 %v208
    %v231 = vunpack.c.h.b16 %v208
    %v232 = vunpack.c.l.b16 %v209
    %v233 = vunpack.c.h.b16 %v209
    %v234 = vpack.c.b16 %v228, %v226
    %v235 = vpack.c.b16 %v229, %v227
    %v236 = vpack.c.b16 %v232, %v230
    %v237 = vpack.c.b16 %v233, %v231
    %vm242 = vcmask 261120
    %v244 = vsel %vm242, %v205, 0
    %246 = vmatprep.subr.bf16.mxu0 %v235
    %247 = vmatpush1.bf16.msra.mxu0 %v234
    %248 = vmatprep.subr.bf16.mxu0 %v237
    %249 = vmatpush1.bf16.msra.mxu0 %v236
    %250 = vmatprep.subr.bf16.mxu0 0
    %251 = vmatpush1.bf16.msra.mxu0 0
    %252 = vmatprep.subr.bf16.mxu0 0
    %253 = vmatpush1.bf16.msra.mxu0 0
    %254 = vmatprep.subr.bf16.mxu0 0
    %255 = vmatpush1.bf16.msra.mxu0 0
    %256 = vmatprep.subr.bf16.mxu0 0
    %257 = vmatpush1.bf16.msra.mxu0 0
    %258 = vmatprep.subr.bf16.mxu0 0
    %259 = vmatpush1.bf16.msra.mxu0 0
    %260 = vmatprep.subr.bf16.mxu0 0
    %261 = vmatpush1.bf16.msra.mxu0 0
    %262 = vmatprep.subr.bf16.mxu0 0
    %263 = vmatpush1.bf16.msra.mxu0 0
    %264 = vmatprep.subr.bf16.mxu0 0
    %265 = vmatpush1.bf16.msra.mxu0 0
    %266 = vmatprep.subr.bf16.mxu0 0
    %267 = vmatpush1.bf16.msra.mxu0 0
    %268 = vmatprep.subr.bf16.mxu0 0
    %269 = vmatpush1.bf16.msra.mxu0 0
    %270 = vmatprep.subr.bf16.mxu0 0
    %271 = vmatpush1.bf16.msra.mxu0 0
    %272 = vmatprep.subr.bf16.mxu0 0
    %273 = vmatpush1.bf16.msra.mxu0 0
    %274 = vmatprep.subr.bf16.mxu0 0
    %275 = vmatpush1.bf16.msra.mxu0 0
    %276 = vmatprep.subr.bf16.mxu0 0
    %277 = vmatpush1.bf16.msra.mxu0 0
    %278 = vmatprep.mubr.bf16.mxu0 0
    %279 = vmatmul.mubr.bf16.gmra.mrb[0].mxu0 %v244
    %v280 = vpop.f32.mrb[0].mxu0
    %v281 = vadd.f32 %v215, %v280
    %v282 = vpop.f32.mrb[0].mxu0
    %v283 = vadd.f32 %v219, %v282
    %v284 = vpop.f32.mrb[0].mxu0
    %v285 = vadd.f32 %v215, %v284
    %v286 = vpop.f32.mrb[0].mxu0
    %v287 = vadd.f32 %v219, %v286
    %288 = vdwg.mxu0
    %v289 = vpack.c.bf16 %v285, %v281
    %v290 = vpack.c.bf16 %v287, %v283
    %v293 = vunpack.c.l.b16 %v289
    %v294 = vunpack.c.l.b16 %v290
    %v295 = vunpack.c.h.b16 %v289
    %v296 = vunpack.c.h.b16 %v290
    %v297 = vpack.c.b16 %v294, %v293
    %v298 = vpack.c.b16 %v296, %v295
    %301 = vst [vmem:[#allocation9] sm:$0xff] %v297
    %302 = vst [vmem:[#allocation9 + $0x8] sm:$0xff] %v298
    // Predicated region
    $region46: #{tpu_custom_call.1} parent=1 // pred_check
      _
    $region47: #{tpu_custom_call.1} parent=1 // pred_check_branch
      %304 = sbr.rel (0) target = $region49
    $region48: #{tpu_custom_call.1} parent=1 // pred_region
      %s306 = ssub.s32 256, 256
      %307 = vsyncadd [#allocation5], %s306
      %s308 = sshll.u32 [#allocation9], 4
      %s309 = int_to_ptr.vmem [resolvable:$true] %s308
      %314 = dma.vmem_to_hbm [thread:$0]  %s309, 256, %s7, [#allocation5], 128, 128, 8
    $region49: #{tpu_custom_call.1} parent=1 // pred_fallthru
      _
    // Predicated region
    $region50: #{tpu_custom_call.1} parent=1 // pred_check
      _
    $region51: #{tpu_custom_call.1} parent=1 // pred_check_branch
      %316 = sbr.rel (0) target = $region53
    $region52: #{tpu_custom_call.1} parent=1 // pred_region
      %317 = dma.done [#allocation5], 256
    $region53: #{tpu_custom_call.1} parent=1 // pred_fallthru
      _
    %318 = vsyncpa [#allocation4], 1
    %319 = vsyncpa [#allocation7], 1
    %320 = vsyncpa [#allocation5], 1

</llo_original>
